<compile_context>
chip_gen: v6e
topology: v6e:2x2x1
jax: 0.10.0
libtpu: 0.0.40
codegen_flags: <defaults>
</compile_context>

<pallas_src>
import functools

import jax
import jax.numpy as jnp
from jax import lax
from jax.experimental import pallas as pl
from jax.experimental.pallas import tpu as pltpu

LEAKY_SLOPE = 0.01              # nn.LeakyReLU() default negative_slope
_VMEM_LIMIT = 48 * 1024 * 1024  # explicit scoped-VMEM budget; safe on v5e/v6e/v7x


def _round_up(x, m):
    return (x + m - 1) // m * m


# ----------------------------------------------------------------------------
# Kernel 1: fused  out = leaky_relu(x @ w + b), tiled over rows (M).
# Used for both convolutions (after im2col).
# ----------------------------------------------------------------------------
def _mm_bias_kernel(x_ref, w_ref, b_ref, o_ref, *, leaky):
    y = jnp.dot(x_ref[...], w_ref[...], preferred_element_type=jnp.float32)
    y = y + b_ref[...]                      # (1, N) broadcasts over rows
    if leaky:
        y = jnp.where(y > 0, y, LEAKY_SLOPE * y)
    o_ref[...] = y.astype(o_ref.dtype)


def pallas_matmul_bias(x, w, b, *, leaky, out_dtype, tm_max=512):
    """x:(M,K) @ w:(K,N) + b:(N,).  M is tiled ("parallel"); w/b stay resident."""
    M, K = x.shape
    N = w.shape[1]
    tm = min(tm_max, _round_up(M, 8))       # sublane-aligned row tile
    M_pad = _round_up(M, tm)                # pad rows so tm divides M
    if M_pad != M:
        x = jnp.pad(x, ((0, M_pad - M), (0, 0)))
    grid = (M_pad // tm,)
    out_itemsize = jnp.dtype(out_dtype).itemsize
    cost = pl.CostEstimate(
        flops=2 * M_pad * K * N,
        transcendentals=0,
        bytes_accessed=(M_pad * K * x.dtype.itemsize + K * N * w.dtype.itemsize
                        + N * 4 + M_pad * N * out_itemsize),
    )
    out = pl.pallas_call(
        functools.partial(_mm_bias_kernel, leaky=leaky),
        out_shape=jax.ShapeDtypeStruct((M_pad, N), out_dtype),
        grid=grid,
        in_specs=[
            pl.BlockSpec((tm, K), lambda i: (i, 0)),   # streamed row slab
            pl.BlockSpec((K, N), lambda i: (0, 0)),    # weight, resident
            pl.BlockSpec((1, N), lambda i: (0, 0)),    # bias, resident
        ],
        out_specs=pl.BlockSpec((tm, N), lambda i: (i, 0)),
        compiler_params=pltpu.CompilerParams(
            dimension_semantics=("parallel",),         # v7x megacore sharding
            vmem_limit_bytes=_VMEM_LIMIT),
        cost_estimate=cost,
    )(x, w, b.reshape(1, N).astype(jnp.float32))
    return out[:M] if M_pad != M else out


# ----------------------------------------------------------------------------
# Kernel 2: final Linear, K-tiled with an f32 accumulator in VMEM scratch.
# ----------------------------------------------------------------------------
def _fc_kernel(x_ref, w_ref, b_ref, o_ref, acc_ref):
    k = pl.program_id(0)

    @pl.when(k == 0)
    def _():
        acc_ref[...] = jnp.zeros_like(acc_ref)

    acc_ref[...] += jnp.dot(x_ref[...], w_ref[...],
                            preferred_element_type=jnp.float32)

    @pl.when(k == pl.num_programs(0) - 1)
    def _():
        o_ref[...] = (acc_ref[...] + b_ref[...]).astype(o_ref.dtype)


def pallas_fc(x, w, b, *, tk_max=512):
    """x:(M,K) @ w:(K,N) + b:(N,).  K is tiled (streamed weight), acc stays in VMEM."""
    M, K = x.shape
    N = w.shape[1]
    M_pad = _round_up(M, 8)
    tk = min(tk_max, _round_up(K, 128))     # lane-aligned K tile
    K_pad = _round_up(K, tk)
    if (M_pad, K_pad) != (M, K):
        x = jnp.pad(x, ((0, M_pad - M), (0, K_pad - K)))
    if K_pad != K:
        w = jnp.pad(w, ((0, K_pad - K), (0, 0)))
    grid = (K_pad // tk,)
    cost = pl.CostEstimate(
        flops=2 * M_pad * K_pad * N,
        transcendentals=0,
        bytes_accessed=(M_pad * K_pad * x.dtype.itemsize
                        + K_pad * N * w.dtype.itemsize
                        + N * 4 + M_pad * N * 4),
    )
    out = pl.pallas_call(
        _fc_kernel,
        out_shape=jax.ShapeDtypeStruct((M_pad, N), jnp.float32),
        grid=grid,
        in_specs=[
            pl.BlockSpec((M_pad, tk), lambda k: (0, k)),   # stream K slabs of x
            pl.BlockSpec((tk, N), lambda k: (k, 0)),       # stream K slabs of w
            pl.BlockSpec((1, N), lambda k: (0, 0)),        # bias, resident
        ],
        out_specs=pl.BlockSpec((M_pad, N), lambda k: (0, 0)),  # resident output
        scratch_shapes=[pltpu.VMEM((M_pad, N), jnp.float32)],
        compiler_params=pltpu.CompilerParams(
            dimension_semantics=("arbitrary",),            # reduction axis
            vmem_limit_bytes=_VMEM_LIMIT),
        cost_estimate=cost,
    )(x, w, b.reshape(1, N).astype(jnp.float32))
    return out[:M]


# ----------------------------------------------------------------------------
# Glue: im2col on NHWC, emitted directly in the kernel's (rows, kh*kw*C) layout.
# ----------------------------------------------------------------------------
def im2col_nhwc(x_nhwc, kh, kw, stride):
    B, H, W, C = x_nhwc.shape
    OH = (H - kh) // stride + 1
    OW = (W - kw) // stride + 1
    cols = []
    for i in range(kh):
        for j in range(kw):
            cols.append(
                x_nhwc[:, i:i + stride * OH:stride, j:j + stride * OW:stride, :])
    p = jnp.stack(cols, axis=3)             # (B, OH, OW, kh*kw, C) — no transpose
    return p.reshape(B * OH * OW, kh * kw * C), OH, OW


def conv2d_pallas(x_nhwc, w2d, bias, *, kh, kw, stride, leaky):
    """w2d: (kh*kw*IC, OC) bf16 (pre-permuted from PyTorch OIHW), bias: (OC,) f32."""
    B = x_nhwc.shape[0]
    OC = w2d.shape[1]
    patches, OH, OW = im2col_nhwc(x_nhwc.astype(jnp.bfloat16), kh, kw, stride)
    out = pallas_matmul_bias(patches, w2d, bias, leaky=leaky,
                             out_dtype=jnp.bfloat16)
    return out.reshape(B, OH, OW, OC)       # stay NHWC; no NCHW round-trip


# ----------------------------------------------------------------------------
# One-time parameter preparation (PyTorch layout -> kernel layout, bf16 cast)
# ----------------------------------------------------------------------------
def prepare_params(params, convh, convw):
    oc1, ic1, kh1, kw1 = params["conv1_w"].shape
    oc2, ic2, kh2, kw2 = params["conv2_w"].shape
    a = params["fc_w"].shape[0]
    # OIHW -> (kh*kw*IC, OC), matching im2col column order (i, j, c).
    w1 = params["conv1_w"].transpose(2, 3, 1, 0).reshape(kh1 * kw1 * ic1, oc1)
    w2 = params["conv2_w"].transpose(2, 3, 1, 0).reshape(kh2 * kw2 * ic2, oc2)
    # Fold PyTorch's NCHW flatten order into the FC weight: (A, C*H*W) -> (H*W*C, A).
    fc_w = (params["fc_w"].reshape(a, oc2, convh, convw)
            .transpose(0, 2, 3, 1)
            .reshape(a, convh * convw * oc2).T)
    return {
        "conv1_w": w1.astype(jnp.bfloat16),
        "conv1_b": params["conv1_b"].astype(jnp.float32),
        "conv2_w": w2.astype(jnp.bfloat16),
        "conv2_b": params["conv2_b"].astype(jnp.float32),
        "fc_w": fc_w.astype(jnp.bfloat16),
        "fc_b": params["fc_b"].astype(jnp.float32),
    }


# ----------------------------------------------------------------------------
# ActionStateModel forward
# ----------------------------------------------------------------------------
def action_state_model_forward(prep, x_nchw):
    # TODO(synk): epsilon-greedy get_action() and the Adam update() are host-side
    # control / optimizer logic, not forward-pass compute; not ported to Pallas.
    x = jnp.transpose(x_nchw, (0, 2, 3, 1))      # single NCHW->NHWC of the input
    h = conv2d_pallas(x, prep["conv1_w"], prep["conv1_b"],
                      kh=3, kw=3, stride=2, leaky=True)
    h = conv2d_pallas(h, prep["conv2_w"], prep["conv2_b"],
                      kh=3, kw=3, stride=2, leaky=True)
    B = h.shape[0]
    flat = h.reshape(B, -1)                      # NHWC flatten (fc_w pre-permuted)
    return pallas_fc(flat, prep["fc_w"], prep["fc_b"])


def init_params(key, H, W, action_dim):
    def csize(s, k=3, st=2):
        return (s - (k - 1) - 1) // st + 1
    convh, convw = csize(csize(H)), csize(csize(W))
    linear_in = convh * convw * 64
    ks = jax.random.split(key, 6)
    s = 0.05
    return {
        "conv1_w": s * jax.random.normal(ks[0], (32, 3, 3, 3), jnp.float32),
        "conv1_b": s * jax.random.normal(ks[1], (32,), jnp.float32),
        "conv2_w": s * jax.random.normal(ks[2], (64, 32, 3, 3), jnp.float32),
        "conv2_b": s * jax.random.normal(ks[3], (64,), jnp.float32),
        "fc_w": s * jax.random.normal(ks[4], (action_dim, linear_in), jnp.float32),
        "fc_b": s * jax.random.normal(ks[5], (action_dim,), jnp.float32),
    }


# ----------------------------------------------------------------------------
# Pure-JAX f32 reference (PyTorch semantics) for the correctness self-check
# ----------------------------------------------------------------------------
def reference_forward(params, x):
    def conv(x, w, b):
        y = lax.conv_general_dilated(
            x, w, window_strides=(2, 2), padding="VALID",
            dimension_numbers=("NCHW", "OIHW", "NCHW"))
        return y + b.reshape(1, -1, 1, 1)
    h = conv(x, params["conv1_w"], params["conv1_b"])
    h = jnp.where(h > 0, h, LEAKY_SLOPE * h)
    h = conv(h, params["conv2_w"], params["conv2_b"])
    h = jnp.where(h > 0, h, LEAKY_SLOPE * h)
    flat = h.reshape(h.shape[0], -1)
    return flat @ params["fc_w"].T + params["fc_b"]


if __name__ == "__main__":
    # Small shapes consistent with the module (original: 3x400x600, action_dim from env).
    B, C, H, W = 2, 3, 18, 18
    ACTION_DIM = 4

    key = jax.random.PRNGKey(0)
    kx, kp = jax.random.split(key)
    x = jax.random.normal(kx, (B, C, H, W), jnp.float32)
    params = init_params(kp, H, W, ACTION_DIM)

    def csize(s, k=3, st=2):
        return (s - (k - 1) - 1) // st + 1
    convh, convw = csize(csize(H)), csize(csize(W))
    prep = prepare_params(params, convh, convw)

    fwd = jax.jit(action_state_model_forward)
    q = jax.block_until_ready(fwd(prep, x))

    q_ref = reference_forward(params, x)
    assert q.shape == (B, ACTION_DIM)
    # bf16 MXU path vs f32 reference: ~1% relative error budget.
    assert jnp.allclose(q, q_ref, atol=2e-2, rtol=2e-2), (
        f"mismatch vs reference:\n{q}\nvs\n{q_ref}")

    print("KERNEL_OK")
</pallas_src>

<mosaic_0001>
module attributes {stable_mosaic.version = 11 : i64} {
  func.func @_mm_bias_kernel(%arg0: i32, %arg1: memref<128x27xbf16, #tpu.memory_space<vmem>>, %arg2: memref<27x32xbf16, #tpu.memory_space<vmem>>, %arg3: memref<1x32xf32, #tpu.memory_space<vmem>>, %arg4: memref<128x32xbf16, #tpu.memory_space<vmem>>) attributes {dimension_semantics = [#tpu.dimension_semantics<parallel>], iteration_bounds = array<i64: 1>, scalar_prefetch = 0 : i64, scratch_operands = 0 : i64, tpu.core_type = #tpu.core_type<tc>, window_params = [{transform_indices = @transform_0, window_bounds = array<i64: 128, 27>}, {pipeline_mode = #tpu.pipeline_mode<synchronous>, transform_indices = @transform_1, window_bounds = array<i64: 27, 32>}, {pipeline_mode = #tpu.pipeline_mode<synchronous>, transform_indices = @transform_2, window_bounds = array<i64: 1, 32>}, {transform_indices = @transform_3, window_bounds = array<i64: 128, 32>}]} {
    %c0 = arith.constant 0 : index
    %c0_0 = arith.constant 0 : index
    %0 = vector.load %arg1[%c0, %c0_0] : memref<128x27xbf16, #tpu.memory_space<vmem>>, vector<128x27xbf16>
    %c0_1 = arith.constant 0 : index
    %c0_2 = arith.constant 0 : index
    %1 = vector.load %arg2[%c0_1, %c0_2] : memref<27x32xbf16, #tpu.memory_space<vmem>>, vector<27x32xbf16>
    %cst = arith.constant dense<0.000000e+00> : vector<128x32xf32>
    %2 = tpu.matmul %0, %1, %cst {dimension_numbers = #tpu.dot_dimension_numbers<[1], [0], [0], [1], [0, 0, 1, 1], [], []>} : vector<128x27xbf16>, vector<27x32xbf16>, vector<128x32xf32> -> vector<128x32xf32>
    %c0_3 = arith.constant 0 : index
    %c0_4 = arith.constant 0 : index
    %3 = vector.load %arg3[%c0_3, %c0_4] : memref<1x32xf32, #tpu.memory_space<vmem>>, vector<1x32xf32>
    %4 = vector.broadcast %3 : vector<1x32xf32> to vector<128x32xf32>
    %5 = arith.addf %2, %4 : vector<128x32xf32>
    %cst_5 = arith.constant 0.000000e+00 : f32
    %6 = vector.broadcast %cst_5 : f32 to vector<128x32xf32>
    %7 = arith.cmpf ogt, %5, %6 : vector<128x32xf32>
    %cst_6 = arith.constant 0.00999999977 : f32
    %8 = vector.broadcast %cst_6 : f32 to vector<128x32xf32>
    %9 = arith.mulf %8, %5 : vector<128x32xf32>
    %10 = arith.select %7, %5, %9 : vector<128x32xi1>, vector<128x32xf32>
    %11 = arith.truncf %10 : vector<128x32xf32> to vector<128x32xbf16>
    %c0_7 = arith.constant 0 : index
    %c0_8 = arith.constant 0 : index
    %12 = vector.load %arg4[%c0_7, %c0_8] : memref<128x32xbf16, #tpu.memory_space<vmem>>, vector<128x32xbf16>
    tpu.vector_store %arg4[%c0_7, %c0_8], %11 {strides = array<i32>} : memref<128x32xbf16, #tpu.memory_space<vmem>>, vector<128x32xbf16>,
    return
  }
  func.func @transform_0(%arg0: i32) -> (i32, i32) {
    %c0_i32 = arith.constant 0 : i32
    %c0_i32_0 = arith.constant 0 : i32
    return %arg0, %c0_i32 : i32, i32
  }
  func.func @transform_1(%arg0: i32) -> (i32, i32) {
    %c0_i32 = arith.constant 0 : i32
    %c0_i32_0 = arith.constant 0 : i32
    %c0_i32_1 = arith.constant 0 : i32
    return %c0_i32, %c0_i32_0 : i32, i32
  }
  func.func @transform_2(%arg0: i32) -> (i32, i32) {
    %c0_i32 = arith.constant 0 : i32
    %c0_i32_0 = arith.constant 0 : i32
    %c0_i32_1 = arith.constant 0 : i32
    return %c0_i32, %c0_i32_0 : i32, i32
  }
  func.func @transform_3(%arg0: i32) -> (i32, i32) {
    %c0_i32 = arith.constant 0 : i32
    %c0_i32_0 = arith.constant 0 : i32
    return %arg0, %c0_i32 : i32, i32
  }
}

module attributes {stable_mosaic.version = 11 : i64} {
  func.func @_mm_bias_kernel(%arg0: i32, %arg1: memref<24x288xbf16, #tpu.memory_space<vmem>>, %arg2: memref<288x64xbf16, #tpu.memory_space<vmem>>, %arg3: memref<1x64xf32, #tpu.memory_space<vmem>>, %arg4: memref<24x64xbf16, #tpu.memory_space<vmem>>) attributes {dimension_semantics = [#tpu.dimension_semantics<parallel>], iteration_bounds = array<i64: 1>, scalar_prefetch = 0 : i64, scratch_operands = 0 : i64, tpu.core_type = #tpu.core_type<tc>, window_params = [{transform_indices = @transform_0, window_bounds = array<i64: 24, 288>}, {pipeline_mode = #tpu.pipeline_mode<synchronous>, transform_indices = @transform_1, window_bounds = array<i64: 288, 64>}, {pipeline_mode = #tpu.pipeline_mode<synchronous>, transform_indices = @transform_2, window_bounds = array<i64: 1, 64>}, {transform_indices = @transform_3, window_bounds = array<i64: 24, 64>}]} {
    %c0 = arith.constant 0 : index
    %c0_0 = arith.constant 0 : index
    %0 = vector.load %arg1[%c0, %c0_0] : memref<24x288xbf16, #tpu.memory_space<vmem>>, vector<24x288xbf16>
    %c0_1 = arith.constant 0 : index
    %c0_2 = arith.constant 0 : index
    %1 = vector.load %arg2[%c0_1, %c0_2] : memref<288x64xbf16, #tpu.memory_space<vmem>>, vector<288x64xbf16>
    %cst = arith.constant dense<0.000000e+00> : vector<24x64xf32>
    %2 = tpu.matmul %0, %1, %cst {dimension_numbers = #tpu.dot_dimension_numbers<[1], [0], [0], [1], [0, 0, 1, 1], [], []>} : vector<24x288xbf16>, vector<288x64xbf16>, vector<24x64xf32> -> vector<24x64xf32>
    %c0_3 = arith.constant 0 : index
    %c0_4 = arith.constant 0 : index
    %3 = vector.load %arg3[%c0_3, %c0_4] : memref<1x64xf32, #tpu.memory_space<vmem>>, vector<1x64xf32>
    %4 = vector.broadcast %3 : vector<1x64xf32> to vector<24x64xf32>
    %5 = arith.addf %2, %4 : vector<24x64xf32>
    %cst_5 = arith.constant 0.000000e+00 : f32
    %6 = vector.broadcast %cst_5 : f32 to vector<24x64xf32>
    %7 = arith.cmpf ogt, %5, %6 : vector<24x64xf32>
    %cst_6 = arith.constant 0.00999999977 : f32
    %8 = vector.broadcast %cst_6 : f32 to vector<24x64xf32>
    %9 = arith.mulf %8, %5 : vector<24x64xf32>
    %10 = arith.select %7, %5, %9 : vector<24x64xi1>, vector<24x64xf32>
    %11 = arith.truncf %10 : vector<24x64xf32> to vector<24x64xbf16>
    %c0_7 = arith.constant 0 : index
    %c0_8 = arith.constant 0 : index
    %12 = vector.load %arg4[%c0_7, %c0_8] : memref<24x64xbf16, #tpu.memory_space<vmem>>, vector<24x64xbf16>
    tpu.vector_store %arg4[%c0_7, %c0_8], %11 {strides = array<i32>} : memref<24x64xbf16, #tpu.memory_space<vmem>>, vector<24x64xbf16>,
    return
  }
  func.func @transform_0(%arg0: i32) -> (i32, i32) {
    %c0_i32 = arith.constant 0 : i32
    %c0_i32_0 = arith.constant 0 : i32
    return %arg0, %c0_i32 : i32, i32
  }
  func.func @transform_1(%arg0: i32) -> (i32, i32) {
    %c0_i32 = arith.constant 0 : i32
    %c0_i32_0 = arith.constant 0 : i32
    %c0_i32_1 = arith.constant 0 : i32
    return %c0_i32, %c0_i32_0 : i32, i32
  }
  func.func @transform_2(%arg0: i32) -> (i32, i32) {
    %c0_i32 = arith.constant 0 : i32
    %c0_i32_0 = arith.constant 0 : i32
    %c0_i32_1 = arith.constant 0 : i32
    return %c0_i32, %c0_i32_0 : i32, i32
  }
  func.func @transform_3(%arg0: i32) -> (i32, i32) {
    %c0_i32 = arith.constant 0 : i32
    %c0_i32_0 = arith.constant 0 : i32
    return %arg0, %c0_i32 : i32, i32
  }
}

module attributes {stable_mosaic.version = 11 : i64} {
  func.func @_fc_kernel(%arg0: i32, %arg1: memref<8x512xbf16, #tpu.memory_space<vmem>>, %arg2: memref<512x4xbf16, #tpu.memory_space<vmem>>, %arg3: memref<1x4xf32, #tpu.memory_space<vmem>>, %arg4: memref<8x4xf32, #tpu.memory_space<vmem>>, %arg5: memref<8x4xf32, #tpu.memory_space<vmem>>) attributes {dimension_semantics = [#tpu.dimension_semantics<arbitrary>], iteration_bounds = array<i64: 2>, scalar_prefetch = 0 : i64, scratch_operands = 1 : i64, tpu.core_type = #tpu.core_type<tc>, window_params = [{transform_indices = @transform_0, window_bounds = array<i64: 8, 512>}, {transform_indices = @transform_1, window_bounds = array<i64: 512, 4>}, {pipeline_mode = #tpu.pipeline_mode<synchronous>, transform_indices = @transform_2, window_bounds = array<i64: 1, 4>}, {pipeline_mode = #tpu.pipeline_mode<synchronous>, transform_indices = @transform_3, window_bounds = array<i64: 8, 4>}]} {
    %c0_i32 = arith.constant 0 : i32
    %0 = arith.cmpi eq, %arg0, %c0_i32 : i32
    %1 = arith.extui %0 : i1 to i32
    %c0_i32_0 = arith.constant 0 : i32
    %2 = arith.cmpi ne, %1, %c0_i32_0 : i32
    scf.if %2 {
      %cst_9 = arith.constant 0.000000e+00 : f32
      %12 = vector.broadcast %cst_9 : f32 to vector<8x4xf32>
      %c0_10 = arith.constant 0 : index
      %c0_11 = arith.constant 0 : index
      %13 = vector.load %arg5[%c0_10, %c0_11] : memref<8x4xf32, #tpu.memory_space<vmem>>, vector<8x4xf32>
      tpu.vector_store %arg5[%c0_10, %c0_11], %12 {strides = array<i32>} : memref<8x4xf32, #tpu.memory_space<vmem>>, vector<8x4xf32>,
    } else {
    }
    %c0 = arith.constant 0 : index
    %c0_1 = arith.constant 0 : index
    %3 = vector.load %arg5[%c0, %c0_1] : memref<8x4xf32, #tpu.memory_space<vmem>>, vector<8x4xf32>
    %c0_2 = arith.constant 0 : index
    %c0_3 = arith.constant 0 : index
    %4 = vector.load %arg1[%c0_2, %c0_3] : memref<8x512xbf16, #tpu.memory_space<vmem>>, vector<8x512xbf16>
    %c0_4 = arith.constant 0 : index
    %c0_5 = arith.constant 0 : index
    %5 = vector.load %arg2[%c0_4, %c0_5] : memref<512x4xbf16, #tpu.memory_space<vmem>>, vector<512x4xbf16>
    %cst = arith.constant dense<0.000000e+00> : vector<8x4xf32>
    %6 = tpu.matmul %4, %5, %cst {dimension_numbers = #tpu.dot_dimension_numbers<[1], [0], [0], [1], [0, 0, 1, 1], [], []>} : vector<8x512xbf16>, vector<512x4xbf16>, vector<8x4xf32> -> vector<8x4xf32>
    %7 = arith.addf %3, %6 : vector<8x4xf32>
    %c0_6 = arith.constant 0 : index
    %c0_7 = arith.constant 0 : index
    %8 = vector.load %arg5[%c0_6, %c0_7] : memref<8x4xf32, #tpu.memory_space<vmem>>, vector<8x4xf32>
    tpu.vector_store %arg5[%c0_6, %c0_7], %7 {strides = array<i32>} : memref<8x4xf32, #tpu.memory_space<vmem>>, vector<8x4xf32>,
    %c1_i32 = arith.constant 1 : i32
    %9 = arith.cmpi eq, %arg0, %c1_i32 : i32
    %10 = arith.extui %9 : i1 to i32
    %c0_i32_8 = arith.constant 0 : i32
    %11 = arith.cmpi ne, %10, %c0_i32_8 : i32
    scf.if %11 {
      %c0_9 = arith.constant 0 : index
      %c0_10 = arith.constant 0 : index
      %12 = vector.load %arg5[%c0_9, %c0_10] : memref<8x4xf32, #tpu.memory_space<vmem>>, vector<8x4xf32>
      %c0_11 = arith.constant 0 : index
      %c0_12 = arith.constant 0 : index
      %13 = vector.load %arg3[%c0_11, %c0_12] : memref<1x4xf32, #tpu.memory_space<vmem>>, vector<1x4xf32>
      %14 = vector.broadcast %13 : vector<1x4xf32> to vector<8x4xf32>
      %15 = arith.addf %12, %14 : vector<8x4xf32>
      %c0_13 = arith.constant 0 : index
      %c0_14 = arith.constant 0 : index
      %16 = vector.load %arg4[%c0_13, %c0_14] : memref<8x4xf32, #tpu.memory_space<vmem>>, vector<8x4xf32>
      tpu.vector_store %arg4[%c0_13, %c0_14], %15 {strides = array<i32>} : memref<8x4xf32, #tpu.memory_space<vmem>>, vector<8x4xf32>,
    } else {
    }
    return
  }
  func.func @transform_0(%arg0: i32) -> (i32, i32) {
    %c0_i32 = arith.constant 0 : i32
    %c0_i32_0 = arith.constant 0 : i32
    return %c0_i32, %arg0 : i32, i32
  }
  func.func @transform_1(%arg0: i32) -> (i32, i32) {
    %c0_i32 = arith.constant 0 : i32
    %c0_i32_0 = arith.constant 0 : i32
    return %arg0, %c0_i32 : i32, i32
  }
  func.func @transform_2(%arg0: i32) -> (i32, i32) {
    %c0_i32 = arith.constant 0 : i32
    %c0_i32_0 = arith.constant 0 : i32
    %c0_i32_1 = arith.constant 0 : i32
    return %c0_i32, %c0_i32_0 : i32, i32
  }
  func.func @transform_3(%arg0: i32) -> (i32, i32) {
    %c0_i32 = arith.constant 0 : i32
    %c0_i32_0 = arith.constant 0 : i32
    %c0_i32_1 = arith.constant 0 : i32
    return %c0_i32, %c0_i32_0 : i32, i32
  }
}

</mosaic_0001>

<llo_original>
// kernel: action_state_model_forward.3
$region0: #{action_state_model_forward.3}
  #allocation0 [shape = 'u32[]', space=smem, size = 0x4, offset = 0x4, fixed_abs, tag = 'smem constant byte address 0x4 - core index']
  #allocation1 [shape = 'u32[144,128]{1,0:T(1,128)}', space=vmem, size = 0x12000, scoped, tag = 'internal scratch']
  %s0 = inlined_call_operand.vmem [shape: bf16[128,27], index: 0, kind: input, shape index: {}]
  %s1 = inlined_call_operand.vmem [shape: bf16[27,32], index: 1, kind: input, shape index: {}]
  %s2 = inlined_call_operand.vmem [shape: f32[1,32], index: 2, kind: input, shape index: {}]
  %s3 = inlined_call_operand.vmem [shape: bf16[128,32], index: 3, kind: output, shape index: {}]
  %s4 = sld [smem:[#allocation0]]
  $region22: #{action_state_model_forward.3} parent=0
    _
  %s6 = ssub.s32 1, %s4
  %s7 = scalar_select 0, %s6, %s4
  // Predicated region
  $region2: #{action_state_model_forward.3} parent=0 // pred_check
    _
  $region3: #{action_state_model_forward.3} parent=0 // pred_check_branch
    %9 = sbr.rel (0) target = $region5
  $region4: #{action_state_model_forward.3} parent=0 // pred_region
    _
  $region5: #{action_state_model_forward.3} parent=0 // pred_fallthru
    _
  // Predicated region
  $region6: #{action_state_model_forward.3} parent=0 // pred_check
    _
  $region7: #{action_state_model_forward.3} parent=0 // pred_check_branch
    %11 = sbr.rel (0) target = $region9
  $region8: #{action_state_model_forward.3} parent=0 // pred_region
    _
  $region9: #{action_state_model_forward.3} parent=0 // pred_fallthru
    _
  // Predicated region
  $region10: #{action_state_model_forward.3} parent=0 // pred_check
    _
  $region11: #{action_state_model_forward.3} parent=0 // pred_check_branch
    %13 = sbr.rel (0) target = $region13
  $region12: #{action_state_model_forward.3} parent=0 // pred_region
    _
  $region13: #{action_state_model_forward.3} parent=0 // pred_fallthru
    _
  %v15 = vld [vmem:[%s0] sm:$0xf]
  %v16 = vld [vmem:[%s0 + $0x4] sm:$0xf]
  %v17 = vld [vmem:[%s0 + $0x8] sm:$0xf]
  %v18 = vld [vmem:[%s0 + $0xc] sm:$0xf]
  %v19 = vld [vmem:[%s0 + $0x10] sm:$0xf]
  %v20 = vld [vmem:[%s0 + $0x14] sm:$0xf]
  %v21 = vld [vmem:[%s0 + $0x18] sm:$0xf]
  %v22 = vld [vmem:[%s0 + $0x1c] sm:$0xf]
  %v23 = vld [vmem:[%s0 + $0x20] sm:$0xf]
  %v24 = vld [vmem:[%s0 + $0x24] sm:$0xf]
  %v25 = vld [vmem:[%s0 + $0x28] sm:$0xf]
  %v26 = vld [vmem:[%s0 + $0x2c] sm:$0xf]
  %v27 = vld [vmem:[%s0 + $0x30] sm:$0xf]
  %v28 = vld [vmem:[%s0 + $0x34] sm:$0xf]
  %v29 = vld [vmem:[%s0 + $0x38] sm:$0xf]
  %v30 = vld [vmem:[%s0 + $0x3c] sm:$0xf]
  %v31 = vld [vmem:[%s1] sm:$0xf]
  %v32 = vld [vmem:[%s1 + $0x4] sm:$0xf]
  %v33 = vld [vmem:[%s1 + $0x8] sm:$0xf]
  %v34 = vld [vmem:[%s1 + $0xc] sm:$0x3]
  %v35 = vld [vmem:[%s2] sm:$0x1]
  %v37 = vlaneseq
  %v38 = vshrl.u32 %v37, 7
  %v39 = vsub.s32 0, %v38
  %v40 = vrot.slane %v35, %v39
  %v58 = vunpack.c.l.b16 %v15
  %v59 = vunpack.c.l.b16 %v16
  %v60 = vunpack.c.l.b16 %v17
  %v61 = vunpack.c.l.b16 %v18
  %v62 = vunpack.c.l.b16 %v19
  %v63 = vunpack.c.l.b16 %v20
  %v64 = vunpack.c.l.b16 %v21
  %v65 = vunpack.c.l.b16 %v22
  %v66 = vunpack.c.l.b16 %v23
  %v67 = vunpack.c.l.b16 %v24
  %v68 = vunpack.c.l.b16 %v25
  %v69 = vunpack.c.l.b16 %v26
  %v70 = vunpack.c.l.b16 %v27
  %v71 = vunpack.c.l.b16 %v28
  %v72 = vunpack.c.l.b16 %v29
  %v73 = vunpack.c.l.b16 %v30
  %v74 = vpack.c.b16 %v59, %v58
  %v75 = vpack.c.b16 %v61, %v60
  %v76 = vpack.c.b16 %v63, %v62
  %v77 = vpack.c.b16 %v65, %v64
  %v78 = vpack.c.b16 %v67, %v66
  %v79 = vpack.c.b16 %v69, %v68
  %v80 = vpack.c.b16 %v71, %v70
  %v81 = vpack.c.b16 %v73, %v72
  %v86 = vunpack.c.l.b16 %v31
  %v87 = vunpack.c.l.b16 %v32
  %v88 = vunpack.c.l.b16 %v33
  %v89 = vunpack.c.l.b16 %v34
  %v90 = vpack.c.b16 %v87, %v86
  %v91 = vpack.c.b16 %v89, %v88
  %vm93 = vcmask 220160
  %v95 = vsel %vm93, %v74, 0
  %v98 = vsel %vm93, %v75, 0
  %v101 = vsel %vm93, %v76, 0
  %v104 = vsel %vm93, %v77, 0
  %v107 = vsel %vm93, %v78, 0
  %v110 = vsel %vm93, %v79, 0
  %v113 = vsel %vm93, %v80, 0
  %v116 = vsel %vm93, %v81, 0
  %vm118 = vcmask 1044480
  %vm119 = vcmask 1045504
  %v120 = vsel %vm118, 4294967295, 65535
  %v121 = vsel %vm119, %v120, 0
  %v123 = vand.u32 %v91, %v121
  %125 = vmatprep.subr.bf16.mxu0 0
  %126 = vmatpush1.bf16.msra.mxu0 0
  %127 = vmatprep.subr.bf16.mxu0 0
  %128 = vmatpush1.bf16.msra.mxu0 0
  %129 = vmatprep.subr.bf16.mxu0 0
  %130 = vmatpush1.bf16.msra.mxu0 0
  %131 = vmatprep.subr.bf16.mxu0 0
  %132 = vmatpush1.bf16.msra.mxu0 0
  %133 = vmatprep.subr.bf16.mxu0 0
  %134 = vmatpush1.bf16.msra.mxu0 0
  %135 = vmatprep.subr.bf16.mxu0 0
  %136 = vmatpush1.bf16.msra.mxu0 0
  %137 = vmatprep.subr.bf16.mxu0 0
  %138 = vmatpush1.bf16.msra.mxu0 %v123
  %139 = vmatprep.subr.bf16.mxu0 0
  %140 = vmatpush1.bf16.msra.mxu0 %v90
  %141 = vmatprep.subr.bf16.mxu0 0
  %142 = vmatpush2.bf16.msra.mxu0 0
  %143 = vmatprep.subr.bf16.mxu0 0
  %144 = vmatpush2.bf16.msra.mxu0 0
  %145 = vmatprep.subr.bf16.mxu0 0
  %146 = vmatpush2.bf16.msra.mxu0 0
  %147 = vmatprep.subr.bf16.mxu0 0
  %148 = vmatpush2.bf16.msra.mxu0 0
  %149 = vmatprep.subr.bf16.mxu0 0
  %150 = vmatpush2.bf16.msra.mxu0 0
  %151 = vmatprep.subr.bf16.mxu0 0
  %152 = vmatpush2.bf16.msra.mxu0 0
  %153 = vmatprep.subr.bf16.mxu0 0
  %154 = vmatpush2.bf16.msra.mxu0 0
  %155 = vmatprep.subr.bf16.mxu0 0
  %156 = vmatpush2.bf16.msra.mxu0 0
  %157 = vmatprep.mubr.bf16.mxu0 0
  %158 = vmatmul.mubr.bf16.gmra.mxu0 %v95
  %v159 = vpop.f32.mrf.mxu0
  %v160 = vadd.f32 %v40, %v159
  %v161 = vpop.f32.mrf.mxu0
  %v162 = vpop.f32.mrf.mxu0
  %v163 = vadd.f32 %v40, %v162
  %v164 = vpop.f32.mrf.mxu0
  %165 = vmatprep.mubr.bf16.mxu0 0
  %166 = vmatmul.mubr.bf16.gmra.mxu0 %v98
  %v167 = vpop.f32.mrf.mxu0
  %v168 = vadd.f32 %v40, %v167
  %v169 = vpop.f32.mrf.mxu0
  %v170 = vpop.f32.mrf.mxu0
  %v171 = vadd.f32 %v40, %v170
  %v172 = vpop.f32.mrf.mxu0
  %173 = vmatprep.mubr.bf16.mxu0 0
  %174 = vmatmul.mubr.bf16.gmra.mxu0 %v101
  %v175 = vpop.f32.mrf.mxu0
  %v176 = vadd.f32 %v40, %v175
  %v177 = vpop.f32.mrf.mxu0
  %v178 = vpop.f32.mrf.mxu0
  %v179 = vadd.f32 %v40, %v178
  %v180 = vpop.f32.mrf.mxu0
  %181 = vmatprep.mubr.bf16.mxu0 0
  %182 = vmatmul.mubr.bf16.gmra.mxu0 %v104
  %v183 = vpop.f32.mrf.mxu0
  %v184 = vadd.f32 %v40, %v183
  %v185 = vpop.f32.mrf.mxu0
  %v186 = vpop.f32.mrf.mxu0
  %v187 = vadd.f32 %v40, %v186
  %v188 = vpop.f32.mrf.mxu0
  %189 = vmatprep.mubr.bf16.mxu0 0
  %190 = vmatmul.mubr.bf16.gmra.mxu0 %v107
  %v191 = vpop.f32.mrf.mxu0
  %v192 = vadd.f32 %v40, %v191
  %v193 = vpop.f32.mrf.mxu0
  %v194 = vpop.f32.mrf.mxu0
  %v195 = vadd.f32 %v40, %v194
  %v196 = vpop.f32.mrf.mxu0
  %197 = vmatprep.mubr.bf16.mxu0 0
  %198 = vmatmul.mubr.bf16.gmra.mxu0 %v110
  %v199 = vpop.f32.mrf.mxu0
  %v200 = vadd.f32 %v40, %v199
  %v201 = vpop.f32.mrf.mxu0
  %v202 = vpop.f32.mrf.mxu0
  %v203 = vadd.f32 %v40, %v202
  %v204 = vpop.f32.mrf.mxu0
  %205 = vmatprep.mubr.bf16.mxu0 0
  %206 = vmatmul.mubr.bf16.gmra.mxu0 %v113
  %v207 = vpop.f32.mrf.mxu0
  %v208 = vadd.f32 %v40, %v207
  %v209 = vpop.f32.mrf.mxu0
  %v210 = vpop.f32.mrf.mxu0
  %v211 = vadd.f32 %v40, %v210
  %v212 = vpop.f32.mrf.mxu0
  %213 = vmatprep.mubr.bf16.mxu0 0
  %214 = vmatmul.mubr.bf16.gmra.mxu0 %v116
  %v215 = vpop.f32.mrf.mxu0
  %v216 = vadd.f32 %v40, %v215
  %v217 = vpop.f32.mrf.mxu0
  %v218 = vpop.f32.mrf.mxu0
  %v219 = vadd.f32 %v40, %v218
  %v220 = vpop.f32.mrf.mxu0
  %221 = vdwg.mxu0
  %vm222 = vcmp.gt.f32.partialorder %v160, 0.0
  %vm223 = vcmp.gt.f32.partialorder %v163, 0.0
  %vm224 = vcmp.gt.f32.partialorder %v168, 0.0
  %vm225 = vcmp.gt.f32.partialorder %v171, 0.0
  %vm226 = vcmp.gt.f32.partialorder %v176, 0.0
  %vm227 = vcmp.gt.f32.partialorder %v179, 0.0
  %vm228 = vcmp.gt.f32.partialorder %v184, 0.0
  %vm229 = vcmp.gt.f32.partialorder %v187, 0.0
  %vm230 = vcmp.gt.f32.partialorder %v192, 0.0
  %vm231 = vcmp.gt.f32.partialorder %v195, 0.0
  %vm232 = vcmp.gt.f32.partialorder %v200, 0.0
  %vm233 = vcmp.gt.f32.partialorder %v203, 0.0
  %vm234 = vcmp.gt.f32.partialorder %v208, 0.0
  %vm235 = vcmp.gt.f32.partialorder %v211, 0.0
  %vm236 = vcmp.gt.f32.partialorder %v216, 0.0
  %vm237 = vcmp.gt.f32.partialorder %v219, 0.0
  %v238 = vmul.f32 %v160, 0.01
  %v239 = vmul.f32 %v163, 0.01
  %v240 = vmul.f32 %v168, 0.01
  %v241 = vmul.f32 %v171, 0.01
  %v242 = vmul.f32 %v176, 0.01
  %v243 = vmul.f32 %v179, 0.01
  %v244 = vmul.f32 %v184, 0.01
  %v245 = vmul.f32 %v187, 0.01
  %v246 = vmul.f32 %v192, 0.01
  %v247 = vmul.f32 %v195, 0.01
  %v248 = vmul.f32 %v200, 0.01
  %v249 = vmul.f32 %v203, 0.01
  %v250 = vmul.f32 %v208, 0.01
  %v251 = vmul.f32 %v211, 0.01
  %v252 = vmul.f32 %v216, 0.01
  %v253 = vmul.f32 %v219, 0.01
  %v254 = vsel %vm222, %v160, %v238
  %v255 = vsel %vm223, %v163, %v239
  %v256 = vsel %vm224, %v168, %v240
  %v257 = vsel %vm225, %v171, %v241
  %v258 = vsel %vm226, %v176, %v242
  %v259 = vsel %vm227, %v179, %v243
  %v260 = vsel %vm228, %v184, %v244
  %v261 = vsel %vm229, %v187, %v245
  %v262 = vsel %vm230, %v192, %v246
  %v263 = vsel %vm231, %v195, %v247
  %v264 = vsel %vm232, %v200, %v248
  %v265 = vsel %vm233, %v203, %v249
  %v266 = vsel %vm234, %v208, %v250
  %v267 = vsel %vm235, %v211, %v251
  %v268 = vsel %vm236, %v216, %v252
  %v269 = vsel %vm237, %v219, %v253
  %v270 = vpack.c.bf16 %v255, %v254
  %v271 = vpack.c.bf16 %v257, %v256
  %v272 = vpack.c.bf16 %v259, %v258
  %v273 = vpack.c.bf16 %v261, %v260
  %v274 = vpack.c.bf16 %v263, %v262
  %v275 = vpack.c.bf16 %v265, %v264
  %v276 = vpack.c.bf16 %v267, %v266
  %v277 = vpack.c.bf16 %v269, %v268
  %v286 = vunpack.c.l.b16 %v270
  %v287 = vunpack.c.h.b16 %v270
  %v288 = vunpack.c.l.b16 %v271
  %v289 = vunpack.c.h.b16 %v271
  %v290 = vunpack.c.l.b16 %v272
  %v291 = vunpack.c.h.b16 %v272
  %v292 = vunpack.c.l.b16 %v273
  %v293 = vunpack.c.h.b16 %v273
  %v294 = vunpack.c.l.b16 %v274
  %v295 = vunpack.c.h.b16 %v274
  %v296 = vunpack.c.l.b16 %v275
  %v297 = vunpack.c.h.b16 %v275
  %v298 = vunpack.c.l.b16 %v276
  %v299 = vunpack.c.h.b16 %v276
  %v300 = vunpack.c.l.b16 %v277
  %v301 = vunpack.c.h.b16 %v277
  %v302 = vpack.c.b16 %v286, %v286
  %v303 = vpack.c.b16 %v287, %v287
  %v304 = vpack.c.b16 %v288, %v288
  %v305 = vpack.c.b16 %v289, %v289
  %v306 = vpack.c.b16 %v290, %v290
  %v307 = vpack.c.b16 %v291, %v291
  %v308 = vpack.c.b16 %v292, %v292
  %v309 = vpack.c.b16 %v293, %v293
  %v310 = vpack.c.b16 %v294, %v294
  %v311 = vpack.c.b16 %v295, %v295
  %v312 = vpack.c.b16 %v296, %v296
  %v313 = vpack.c.b16 %v297, %v297
  %v314 = vpack.c.b16 %v298, %v298
  %v315 = vpack.c.b16 %v299, %v299
  %v316 = vpack.c.b16 %v300, %v300
  %v317 = vpack.c.b16 %v301, %v301
  %vm334 = vcmask 257024
  %335 = vst.msk [vmem:[%s3] sm:$0xf] %vm334, %v302
  %336 = vst.msk [vmem:[%s3 + $0x4] sm:$0xf] %vm334, %v303
  %337 = vst.msk [vmem:[%s3 + $0x8] sm:$0xf] %vm334, %v304
  %338 = vst.msk [vmem:[%s3 + $0xc] sm:$0xf] %vm334, %v305
  %339 = vst.msk [vmem:[%s3 + $0x10] sm:$0xf] %vm334, %v306
  %340 = vst.msk [vmem:[%s3 + $0x14] sm:$0xf] %vm334, %v307
  %341 = vst.msk [vmem:[%s3 + $0x18] sm:$0xf] %vm334, %v308
  %342 = vst.msk [vmem:[%s3 + $0x1c] sm:$0xf] %vm334, %v309
  %343 = vst.msk [vmem:[%s3 + $0x20] sm:$0xf] %vm334, %v310
  %344 = vst.msk [vmem:[%s3 + $0x24] sm:$0xf] %vm334, %v311
  %345 = vst.msk [vmem:[%s3 + $0x28] sm:$0xf] %vm334, %v312
  %346 = vst.msk [vmem:[%s3 + $0x2c] sm:$0xf] %vm334, %v313
  %347 = vst.msk [vmem:[%s3 + $0x30] sm:$0xf] %vm334, %v314
  %348 = vst.msk [vmem:[%s3 + $0x34] sm:$0xf] %vm334, %v315
  %349 = vst.msk [vmem:[%s3 + $0x38] sm:$0xf] %vm334, %v316
  %350 = vst.msk [vmem:[%s3 + $0x3c] sm:$0xf] %vm334, %v317
  // Predicated region
  $region14: #{action_state_model_forward.3} parent=0 // pred_check
    _
  $region15: #{action_state_model_forward.3} parent=0 // pred_check_branch
    %352 = sbr.rel (0) target = $region17
  $region16: #{action_state_model_forward.3} parent=0 // pred_region
    _
  $region17: #{action_state_model_forward.3} parent=0 // pred_fallthru
    _
  // Predicated region
  $region18: #{action_state_model_forward.3} parent=0 // pred_check
    _
  $region19: #{action_state_model_forward.3} parent=0 // pred_check_branch
    %354 = sbr.rel (0) target = $region21
  $region20: #{action_state_model_forward.3} parent=0 // pred_region
    _
  $region21: #{action_state_model_forward.3} parent=0 // pred_fallthru
    _

// kernel: action_state_model_forward.4
$region0: #{action_state_model_forward.4}
  #allocation0 [shape = 'u32[]', space=smem, size = 0x4, offset = 0x4, fixed_abs, tag = 'smem constant byte address 0x4 - core index']
  #allocation1 [shape = 'u32[144,128]{1,0:T(1,128)}', space=vmem, size = 0x12000, scoped, tag = 'internal scratch']
  %s0 = inlined_call_operand.vmem [shape: bf16[24,288], index: 0, kind: input, shape index: {}]
  %s1 = inlined_call_operand.vmem [shape: bf16[288,64], index: 1, kind: input, shape index: {}]
  %s2 = inlined_call_operand.vmem [shape: f32[1,64], index: 2, kind: input, shape index: {}]
  %s3 = inlined_call_operand.vmem [shape: bf16[24,64], index: 3, kind: output, shape index: {}]
  %s4 = sld [smem:[#allocation0]]
  $region22: #{action_state_model_forward.4} parent=0
    _
  %s6 = ssub.s32 1, %s4
  %s7 = scalar_select 0, %s6, %s4
  // Predicated region
  $region2: #{action_state_model_forward.4} parent=0 // pred_check
    _
  $region3: #{action_state_model_forward.4} parent=0 // pred_check_branch
    %9 = sbr.rel (0) target = $region5
  $region4: #{action_state_model_forward.4} parent=0 // pred_region
    _
  $region5: #{action_state_model_forward.4} parent=0 // pred_fallthru
    _
  // Predicated region
  $region6: #{action_state_model_forward.4} parent=0 // pred_check
    _
  $region7: #{action_state_model_forward.4} parent=0 // pred_check_branch
    %11 = sbr.rel (0) target = $region9
  $region8: #{action_state_model_forward.4} parent=0 // pred_region
    _
  $region9: #{action_state_model_forward.4} parent=0 // pred_fallthru
    _
  // Predicated region
  $region10: #{action_state_model_forward.4} parent=0 // pred_check
    _
  $region11: #{action_state_model_forward.4} parent=0 // pred_check_branch
    %13 = sbr.rel (0) target = $region13
  $region12: #{action_state_model_forward.4} parent=0 // pred_region
    _
  $region13: #{action_state_model_forward.4} parent=0 // pred_fallthru
    _
  %v15 = vld [vmem:[%s0] sm:$0xff]
  %v16 = vld [vmem:[%s0 + $0x8] sm:$0xf]
  %v17 = vld [vmem:[%s0 + $0xc] sm:$0xff]
  %v18 = vld [vmem:[%s0 + $0x14] sm:$0xf]
  %v19 = vld [vmem:[%s0 + $0x18] sm:$0xff]
  %v20 = vld [vmem:[%s0 + $0x20] sm:$0xf]
  %v21 = vld [vmem:[%s1] sm:$0xf]
  %v22 = vld [vmem:[%s1 + $0x4] sm:$0xf]
  %v23 = vld [vmem:[%s1 + $0x8] sm:$0xf]
  %v24 = vld [vmem:[%s1 + $0xc] sm:$0xf]
  %v25 = vld [vmem:[%s1 + $0x10] sm:$0xf]
  %v26 = vld [vmem:[%s1 + $0x14] sm:$0xf]
  %v27 = vld [vmem:[%s1 + $0x18] sm:$0xf]
  %v28 = vld [vmem:[%s1 + $0x1c] sm:$0xf]
  %v29 = vld [vmem:[%s1 + $0x20] sm:$0xf]
  %v30 = vld [vmem:[%s1 + $0x24] sm:$0xf]
  %v31 = vld [vmem:[%s1 + $0x28] sm:$0xf]
  %v32 = vld [vmem:[%s1 + $0x2c] sm:$0xf]
  %v33 = vld [vmem:[%s1 + $0x30] sm:$0xf]
  %v34 = vld [vmem:[%s1 + $0x34] sm:$0xf]
  %v35 = vld [vmem:[%s1 + $0x38] sm:$0xf]
  %v36 = vld [vmem:[%s1 + $0x3c] sm:$0xf]
  %v37 = vld [vmem:[%s1 + $0x40] sm:$0xf]
  %v38 = vld [vmem:[%s1 + $0x44] sm:$0xf]
  %v39 = vld [vmem:[%s1 + $0x48] sm:$0xf]
  %v40 = vld [vmem:[%s1 + $0x4c] sm:$0xf]
  %v41 = vld [vmem:[%s1 + $0x50] sm:$0xf]
  %v42 = vld [vmem:[%s1 + $0x54] sm:$0xf]
  %v43 = vld [vmem:[%s1 + $0x58] sm:$0xf]
  %v44 = vld [vmem:[%s1 + $0x5c] sm:$0xf]
  %v45 = vld [vmem:[%s1 + $0x60] sm:$0xf]
  %v46 = vld [vmem:[%s1 + $0x64] sm:$0xf]
  %v47 = vld [vmem:[%s1 + $0x68] sm:$0xf]
  %v48 = vld [vmem:[%s1 + $0x6c] sm:$0xf]
  %v49 = vld [vmem:[%s1 + $0x70] sm:$0xf]
  %v50 = vld [vmem:[%s1 + $0x74] sm:$0xf]
  %v51 = vld [vmem:[%s1 + $0x78] sm:$0xf]
  %v52 = vld [vmem:[%s1 + $0x7c] sm:$0xf]
  %v53 = vld [vmem:[%s1 + $0x80] sm:$0xf]
  %v54 = vld [vmem:[%s1 + $0x84] sm:$0xf]
  %v55 = vld [vmem:[%s1 + $0x88] sm:$0xf]
  %v56 = vld [vmem:[%s1 + $0x8c] sm:$0xf]
  %v57 = vld [vmem:[%s2] sm:$0x1]
  %v59 = vlaneseq
  %v60 = vshrl.u32 %v59, 7
  %v61 = vsub.s32 0, %v60
  %v62 = vrot.slane %v57, %v61
  %v70 = vunpack.c.l.b16 %v15
  %v71 = vunpack.c.h.b16 %v15
  %v72 = vunpack.c.l.b16 %v16
  %v73 = vunpack.c.l.b16 %v17
  %v74 = vunpack.c.h.b16 %v17
  %v75 = vunpack.c.l.b16 %v18
  %v76 = vunpack.c.l.b16 %v19
  %v77 = vunpack.c.h.b16 %v19
  %v78 = vunpack.c.l.b16 %v20
  %v79 = vpack.c.b16 %v73, %v70
  %v80 = vpack.c.b16 %v74, %v71
  %v81 = vpack.c.b16 %v75, %v72
  %v82 = vpack.c.b16 %v76, %v76
  %v83 = vpack.c.b16 %v77, %v77
  %v84 = vpack.c.b16 %v78, %v78
  %v125 = vunpack.c.l.b16 %v21
  %v126 = vunpack.c.l.b16 %v22
  %v127 = vunpack.c.l.b16 %v23
  %v128 = vunpack.c.l.b16 %v24
  %v129 = vunpack.c.l.b16 %v25
  %v130 = vunpack.c.l.b16 %v26
  %v131 = vunpack.c.l.b16 %v27
  %v132 = vunpack.c.l.b16 %v28
  %v133 = vunpack.c.l.b16 %v29
  %v134 = vunpack.c.l.b16 %v30
  %v135 = vunpack.c.l.b16 %v31
  %v136 = vunpack.c.l.b16 %v32
  %v137 = vunpack.c.l.b16 %v33
  %v138 = vunpack.c.l.b16 %v34
  %v139 = vunpack.c.l.b16 %v35
  %v140 = vunpack.c.l.b16 %v36
  %v141 = vunpack.c.l.b16 %v37
  %v142 = vunpack.c.l.b16 %v38
  %v143 = vunpack.c.l.b16 %v39
  %v144 = vunpack.c.l.b16 %v40
  %v145 = vunpack.c.l.b16 %v41
  %v146 = vunpack.c.l.b16 %v42
  %v147 = vunpack.c.l.b16 %v43
  %v148 = vunpack.c.l.b16 %v44
  %v149 = vunpack.c.l.b16 %v45
  %v150 = vunpack.c.l.b16 %v46
  %v151 = vunpack.c.l.b16 %v47
  %v152 = vunpack.c.l.b16 %v48
  %v153 = vunpack.c.l.b16 %v49
  %v154 = vunpack.c.l.b16 %v50
  %v155 = vunpack.c.l.b16 %v51
  %v156 = vunpack.c.l.b16 %v52
  %v157 = vunpack.c.l.b16 %v53
  %v158 = vunpack.c.l.b16 %v54
  %v159 = vunpack.c.l.b16 %v55
  %v160 = vunpack.c.l.b16 %v56
  %v161 = vpack.c.b16 %v126, %v125
  %v162 = vpack.c.b16 %v128, %v127
  %v163 = vpack.c.b16 %v130, %v129
  %v164 = vpack.c.b16 %v132, %v131
  %v165 = vpack.c.b16 %v134, %v133
  %v166 = vpack.c.b16 %v136, %v135
  %v167 = vpack.c.b16 %v138, %v137
  %v168 = vpack.c.b16 %v140, %v139
  %v169 = vpack.c.b16 %v142, %v141
  %v170 = vpack.c.b16 %v144, %v143
  %v171 = vpack.c.b16 %v146, %v145
  %v172 = vpack.c.b16 %v148, %v147
  %v173 = vpack.c.b16 %v150, %v149
  %v174 = vpack.c.b16 %v152, %v151
  %v175 = vpack.c.b16 %v154, %v153
  %v176 = vpack.c.b16 %v156, %v155
  %v177 = vpack.c.b16 %v158, %v157
  %v178 = vpack.c.b16 %v160, %v159
  %vm197 = vcmask 261120
  %v199 = vsel %vm197, %v81, 0
  %v202 = vsel %vm197, %v84, 0
  %204 = vmatprep.subr.bf16.mxu0 0
  %205 = vmatpush1.bf16.msra.mxu0 %v168
  %206 = vmatprep.subr.bf16.mxu0 0
  %207 = vmatpush1.bf16.msra.mxu0 %v167
  %208 = vmatprep.subr.bf16.mxu0 0
  %209 = vmatpush1.bf16.msra.mxu0 %v166
  %210 = vmatprep.subr.bf16.mxu0 0
  %211 = vmatpush1.bf16.msra.mxu0 %v165
  %212 = vmatprep.subr.bf16.mxu0 0
  %213 = vmatpush1.bf16.msra.mxu0 %v164
  %214 = vmatprep.subr.bf16.mxu0 0
  %215 = vmatpush1.bf16.msra.mxu0 %v163
  %216 = vmatprep.subr.bf16.mxu0 0
  %217 = vmatpush1.bf16.msra.mxu0 %v162
  %218 = vmatprep.subr.bf16.mxu0 0
  %219 = vmatpush1.bf16.msra.mxu0 %v161
  %220 = vmatprep.subr.bf16.mxu0 0
  %221 = vmatpush2.bf16.msra.mxu0 %v176
  %222 = vmatprep.subr.bf16.mxu0 0
  %223 = vmatpush2.bf16.msra.mxu0 %v175
  %224 = vmatprep.subr.bf16.mxu0 0
  %225 = vmatpush2.bf16.msra.mxu0 %v174
  %226 = vmatprep.subr.bf16.mxu0 0
  %227 = vmatpush2.bf16.msra.mxu0 %v173
  %228 = vmatprep.subr.bf16.mxu0 0
  %229 = vmatpush2.bf16.msra.mxu0 %v172
  %230 = vmatprep.subr.bf16.mxu0 0
  %231 = vmatpush2.bf16.msra.mxu0 %v171
  %232 = vmatprep.subr.bf16.mxu0 0
  %233 = vmatpush2.bf16.msra.mxu0 %v170
  %234 = vmatprep.subr.bf16.mxu0 0
  %235 = vmatpush2.bf16.msra.mxu0 %v169
  %236 = vmatprep.mubr.bf16.mxu0 %v80
  %237 = vmatmul.mubr.bf16.gmra.mxu0 %v79
  %v238 = vpop.f32.mrf.mxu0
  %v239 = vadd.f32 %v62, %v238
  %v240 = vpop.f32.mrf.mxu0
  %v241 = vpop.f32.mrf.mxu0
  %v242 = vadd.f32 %v62, %v241
  %v243 = vpop.f32.mrf.mxu0
  %244 = vmatprep.mubr.bf16.mxu0 %v83
  %245 = vmatmul.mubr.bf16.gmra.mxu0 %v82
  %v246 = vpop.f32.mrf.mxu0
  %v247 = vadd.f32 %v62, %v246
  %v248 = vpop.f32.mrf.mxu0
  %v249 = vpop.f32.mrf.mxu0
  %v250 = vpop.f32.mrf.mxu0
  %251 = vdwg.mxu0
  %252 = vmatprep.subr.bf16.mxu0 0
  %253 = vmatpush1.bf16.msra.mxu0 0
  %254 = vmatprep.subr.bf16.mxu0 0
  %255 = vmatpush1.bf16.msra.mxu0 0
  %256 = vmatprep.subr.bf16.mxu0 0
  %257 = vmatpush1.bf16.msra.mxu0 0
  %258 = vmatprep.subr.bf16.mxu0 0
  %259 = vmatpush1.bf16.msra.mxu0 0
  %260 = vmatprep.subr.bf16.mxu0 0
  %261 = vmatpush1.bf16.msra.mxu0 0
  %262 = vmatprep.subr.bf16.mxu0 0
  %263 = vmatpush1.bf16.msra.mxu0 0
  %264 = vmatprep.subr.bf16.mxu0 0
  %265 = vmatpush1.bf16.msra.mxu0 %v178
  %266 = vmatprep.subr.bf16.mxu0 0
  %267 = vmatpush1.bf16.msra.mxu0 %v177
  %268 = vmatprep.subr.bf16.mxu0 0
  %269 = vmatpush2.bf16.msra.mxu0 0
  %270 = vmatprep.subr.bf16.mxu0 0
  %271 = vmatpush2.bf16.msra.mxu0 0
  %272 = vmatprep.subr.bf16.mxu0 0
  %273 = vmatpush2.bf16.msra.mxu0 0
  %274 = vmatprep.subr.bf16.mxu0 0
  %275 = vmatpush2.bf16.msra.mxu0 0
  %276 = vmatprep.subr.bf16.mxu0 0
  %277 = vmatpush2.bf16.msra.mxu0 0
  %278 = vmatprep.subr.bf16.mxu0 0
  %279 = vmatpush2.bf16.msra.mxu0 0
  %280 = vmatprep.subr.bf16.mxu0 0
  %281 = vmatpush2.bf16.msra.mxu0 0
  %282 = vmatprep.subr.bf16.mxu0 0
  %283 = vmatpush2.bf16.msra.mxu0 0
  %284 = vmatprep.mubr.bf16.mxu0 0
  %285 = vmatmul.mubr.bf16.gmra.mxu0 %v199
  %v286 = vpop.f32.mrf.mxu0
  %v287 = vadd.f32 %v239, %v286
  %v288 = vpop.f32.mrf.mxu0
  %v289 = vpop.f32.mrf.mxu0
  %v290 = vadd.f32 %v242, %v289
  %v291 = vpop.f32.mrf.mxu0
  %292 = vmatprep.mubr.bf16.mxu0 0
  %293 = vmatmul.mubr.bf16.gmra.mxu0 %v202
  %v294 = vpop.f32.mrf.mxu0
  %v295 = vadd.f32 %v247, %v294
  %v296 = vpop.f32.mrf.mxu0
  %v297 = vpop.f32.mrf.mxu0
  %v298 = vpop.f32.mrf.mxu0
  %299 = vdwg.mxu0
  %vm300 = vcmp.gt.f32.partialorder %v287, 0.0
  %vm301 = vcmp.gt.f32.partialorder %v290, 0.0
  %vm302 = vcmp.gt.f32.partialorder %v295, 0.0
  %v303 = vmul.f32 %v287, 0.01
  %v304 = vmul.f32 %v290, 0.01
  %v305 = vmul.f32 %v295, 0.01
  %v306 = vsel %vm300, %v287, %v303
  %v307 = vsel %vm301, %v290, %v304
  %v308 = vsel %vm302, %v295, %v305
  %v309 = vpack.c.bf16 %v307, %v306
  %v310 = vpack.c.bf16 %v308, %v308
  %v313 = vunpack.c.l.b16 %v309
  %v314 = vunpack.c.h.b16 %v309
  %v315 = vunpack.c.l.b16 %v310
  %v316 = vpack.c.b16 %v313, %v313
  %v317 = vpack.c.b16 %v314, %v314
  %v318 = vpack.c.b16 %v315, %v315
  %vm322 = vcmask 519168
  %323 = vst.msk [vmem:[%s3] sm:$0xf] %vm322, %v316
  %324 = vst.msk [vmem:[%s3 + $0x4] sm:$0xf] %vm322, %v317
  %325 = vst.msk [vmem:[%s3 + $0x8] sm:$0xf] %vm322, %v318
  // Predicated region
  $region14: #{action_state_model_forward.4} parent=0 // pred_check
    _
  $region15: #{action_state_model_forward.4} parent=0 // pred_check_branch
    %327 = sbr.rel (0) target = $region17
  $region16: #{action_state_model_forward.4} parent=0 // pred_region
    _
  $region17: #{action_state_model_forward.4} parent=0 // pred_fallthru
    _
  // Predicated region
  $region18: #{action_state_model_forward.4} parent=0 // pred_check
    _
  $region19: #{action_state_model_forward.4} parent=0 // pred_check_branch
    %329 = sbr.rel (0) target = $region21
  $region20: #{action_state_model_forward.4} parent=0 // pred_region
    _
  $region21: #{action_state_model_forward.4} parent=0 // pred_fallthru
    _

// kernel: action_state_model_forward.5
$region0: #{action_state_model_forward.5}
  #allocation0 [shape = 'u32[]', space=smem, size = 0x4, offset = 0x4, fixed_abs, tag = 'smem constant byte address 0x4 - core index']
  #allocation1 [shape = 'u32[144,128]{1,0:T(1,128)}', space=vmem, size = 0x12000, scoped, tag = 'internal scratch']
  #allocation2 [shape = 'f32[8,4]{1,0:T(8,128)}', space=vmem, size = 0x1000, scoped, tag = 'scratch operand']
  %s0 = inlined_call_operand.vmem [shape: bf16[8,1024], index: 0, kind: input, shape index: {}]
  %s1 = inlined_call_operand.vmem [shape: bf16[1024,4], index: 1, kind: input, shape index: {}]
  %s2 = inlined_call_operand.vmem [shape: f32[1,4], index: 2, kind: input, shape index: {}]
  %s3 = inlined_call_operand.vmem [shape: f32[8,4], index: 3, kind: output, shape index: {}]
  %s4 = sld [smem:[#allocation0]]
  $region53: #{action_state_model_forward.5} parent=0
    _
  %s6 = ssub.s32 1, %s4
  %s7 = scalar_select 0, %s6, %s4
  loop: start=0, step=1, limit=4
  $region2: #{action_state_model_forward.5} parent=0 // loop_pre_header
    _
  $region3: #{action_state_model_forward.5} parent=0 // loop_header
    %s9 = sphi 0, %s13
    %p10 = scmp.ge.s32.totalorder %s9, 4
    %s19 = sphi 0, %s21
    %s22 = sphi 0, %s19
    %s23 = sphi 0, %s22
    %s39 = sphi 0, %s23
    %s45 = sphi 0, %s47
    %s48 = sphi 0, %s45
    %s49 = sphi 0, %s48
    %s65 = sphi 0, %s49
    %s69 = sphi 0, %s69
    %s71 = sphi 0, %s69
    %s72 = sphi 0, %s71
    %s86 = sphi 0, %s72
    %s90 = sphi 0, %s90
    %s92 = sphi 0, %s90
    %s93 = sphi 0, %s92
    %s107 = sphi 0, %s93
  $region4: #{action_state_model_forward.5} parent=0 // loop_header_branch
    %12 = sbr.rel (%p10) target = $region8
  $region5: #{action_state_model_forward.5} parent=0 // loop_body
    %s14 = ssub.s32 %s9, 1
    %s15 = ssub.s32 %s9, 2
    %s16 = sadd.s32 %s9, 1
    %s17 = ssub.s32 %s9, %s16
    %p18 = scmp.eq.s32.totalorder %s17, 0
    %s20 = sadd.s32 %s19, 1
    %s21 = scalar_select %p18, %s19, %s20
    %p24 = pneg %p18
    %p25 = scmp.eq.s32.totalorder %s9, 1
    %p26 = por %p24, %p25
    %p27 = scmp.ne.s32.totalorder %s19, %s22
    %p28 = scmp.eq.s32.totalorder %s9, 0
    %p29 = por %p27, %p28
    %p30 = scmp.ne.s32.totalorder %s19, %s22
    %p31 = scmp.eq.s32.totalorder %s14, 1
    %p32 = por %p30, %p31
    %p33 = scmp.ne.s32.totalorder %s22, %s23
    %p34 = scmp.eq.s32.totalorder %s14, 0
    %p35 = por %p33, %p34
    %p36 = scmp.ne.s32.totalorder %s22, %s23
    %p37 = scmp.eq.s32.totalorder %s15, 1
    %p38 = por %p36, %p37
    %p40 = scmp.ne.s32.totalorder %s23, %s39
    %p41 = scmp.eq.s32.totalorder %s15, 0
    %p42 = por %p40, %p41
    %s43 = ssub.s32 %s9, %s16
    %p44 = scmp.eq.s32.totalorder %s43, 0
    %s46 = sadd.s32 %s45, 1
    %s47 = scalar_select %p44, %s45, %s46
    %p50 = pneg %p44
    %p51 = scmp.eq.s32.totalorder %s9, 1
    %p52 = por %p50, %p51
    %p53 = scmp.ne.s32.totalorder %s45, %s48
    %p54 = scmp.eq.s32.totalorder %s9, 0
    %p55 = por %p53, %p54
    %p56 = scmp.ne.s32.totalorder %s45, %s48
    %p57 = scmp.eq.s32.totalorder %s14, 1
    %p58 = por %p56, %p57
    %p59 = scmp.ne.s32.totalorder %s48, %s49
    %p60 = scmp.eq.s32.totalorder %s14, 0
    %p61 = por %p59, %p60
    %p62 = scmp.ne.s32.totalorder %s48, %s49
    %p63 = scmp.eq.s32.totalorder %s15, 1
    %p64 = por %p62, %p63
    %p66 = scmp.ne.s32.totalorder %s49, %s65
    %p67 = scmp.eq.s32.totalorder %s15, 0
    %p68 = por %p66, %p67
    %s70 = sadd.s32 %s69, 1
    %p73 = scmp.eq.s32.totalorder %s9, 1
    %p74 = scmp.ne.s32.totalorder %s69, %s71
    %p75 = scmp.eq.s32.totalorder %s9, 0
    %p76 = por %p74, %p75
    %p77 = scmp.ne.s32.totalorder %s69, %s71
    %p78 = scmp.eq.s32.totalorder %s14, 1
    %p79 = por %p77, %p78
    %p80 = scmp.ne.s32.totalorder %s71, %s72
    %p81 = scmp.eq.s32.totalorder %s14, 0
    %p82 = por %p80, %p81
    %p83 = scmp.ne.s32.totalorder %s71, %s72
    %p84 = scmp.eq.s32.totalorder %s15, 1
    %p85 = por %p83, %p84
    %p87 = scmp.ne.s32.totalorder %s72, %s86
    %p88 = scmp.eq.s32.totalorder %s15, 0
    %p89 = por %p87, %p88
    %s91 = sadd.s32 %s90, 1
    %p94 = scmp.eq.s32.totalorder %s9, 1
    %p95 = scmp.ne.s32.totalorder %s90, %s92
    %p96 = scmp.eq.s32.totalorder %s9, 0
    %p97 = por %p95, %p96
    %p98 = scmp.ne.s32.totalorder %s90, %s92
    %p99 = scmp.eq.s32.totalorder %s14, 1
    %p100 = por %p98, %p99
    %p101 = scmp.ne.s32.totalorder %s92, %s93
    %p102 = scmp.eq.s32.totalorder %s14, 0
    %p103 = por %p101, %p102
    %p104 = scmp.ne.s32.totalorder %s92, %s93
    %p105 = scmp.eq.s32.totalorder %s15, 1
    %p106 = por %p104, %p105
    %p108 = scmp.ne.s32.totalorder %s93, %s107
    %p109 = scmp.eq.s32.totalorder %s15, 0
    %p110 = por %p108, %p109
    %p111 = scmp.le.s32.totalorder 1, %s9
    %p112 = scmp.lt.s32.totalorder %s9, 3
    %p113 = pnand %p111, %p112
    %p114 = pneg %p113
    // Predicated region
    $region9: #{action_state_model_forward.5} parent=5 // pred_check
      _
    $region10: #{action_state_model_forward.5} parent=5 // pred_check_branch
      %116 = sbr.rel (%p113) target = $region12
    $region11: #{action_state_model_forward.5} parent=5 // pred_region
      %s117 = ssub.s32 %s9, 1
      // Predicated region
      $region13: #{action_state_model_forward.5} parent=11 // pred_check
        %p118 = pneg %p82
      $region14: #{action_state_model_forward.5} parent=11 // pred_check_branch
        %120 = sbr.rel (%p118) target = $region16
      $region15: #{action_state_model_forward.5} parent=11 // pred_region
        _
      $region16: #{action_state_model_forward.5} parent=11 // pred_fallthru
        _
    $region12: #{action_state_model_forward.5} parent=5 // pred_fallthru
      _
    %p121 = scmp.lt.s32.totalorder %s9, 2
    // Predicated region
    $region17: #{action_state_model_forward.5} parent=5 // pred_check
      %p122 = pneg %p121
    $region18: #{action_state_model_forward.5} parent=5 // pred_check_branch
      %124 = sbr.rel (%p122) target = $region20
    $region19: #{action_state_model_forward.5} parent=5 // pred_region
      // Predicated region
      $region21: #{action_state_model_forward.5} parent=19 // pred_check
        %p125 = pneg %p29
      $region22: #{action_state_model_forward.5} parent=19 // pred_check_branch
        %127 = sbr.rel (%p125) target = $region24
      $region23: #{action_state_model_forward.5} parent=19 // pred_region
        %s128 = smul.u32 4, %s9
        %p129 = scmp.lt.s32.totalorder %s128, 7
        %s130 = scalar_select %p129, %s128, 7
        %s131 = smul.addr %s130, 4
        %s132 = scalar_lea.vmem %s0, %s131
        %s133 = smul.u32 4, %s9
      $region24: #{action_state_model_forward.5} parent=19 // pred_fallthru
        _
      // Predicated region
      $region25: #{action_state_model_forward.5} parent=19 // pred_check
        %p134 = pneg %p55
      $region26: #{action_state_model_forward.5} parent=19 // pred_check_branch
        %136 = sbr.rel (%p134) target = $region28
      $region27: #{action_state_model_forward.5} parent=19 // pred_region
        %s137 = smul.u32 64, %s9
        %p138 = scmp.lt.s32.totalorder %s137, 127
        %s139 = scalar_select %p138, %s137, 127
        %s140 = smul.addr %s139, 4
        %s141 = scalar_lea.vmem %s1, %s140
        %s142 = smul.u32 64, %s9
      $region28: #{action_state_model_forward.5} parent=19 // pred_fallthru
        _
    $region20: #{action_state_model_forward.5} parent=5 // pred_fallthru
      _
    %p143 = scmp.le.s32.totalorder 1, %s9
    %p144 = scmp.lt.s32.totalorder %s9, 3
    %p145 = pnand %p143, %p144
    %p146 = pneg %p145
    // Predicated region
    $region29: #{action_state_model_forward.5} parent=5 // pred_check
      _
    $region30: #{action_state_model_forward.5} parent=5 // pred_check_branch
      %148 = sbr.rel (%p145) target = $region32
    $region31: #{action_state_model_forward.5} parent=5 // pred_region
      %s149 = ssub.s32 %s9, 1
      %s150 = smul.u32 4, %s14
      %p151 = scmp.lt.s32.totalorder %s150, 7
      %s152 = scalar_select %p151, %s150, 7
      %s153 = smul.addr %s152, 4
      %s154 = scalar_lea.vmem %s0, %s153
      %p155 = pneg %p35
      %p156 = pneg %p32
      %s157 = smul.u32 64, %s14
      %p158 = scmp.lt.s32.totalorder %s157, 127
      %s159 = scalar_select %p158, %s157, 127
      %s160 = smul.addr %s159, 4
      %s161 = scalar_lea.vmem %s1, %s160
      %p162 = pneg %p61
      %p163 = pneg %p58
      %p164 = pneg %p82
      %p165 = pneg %p79
      %p166 = pneg %p103
      %p167 = pneg %p100
      %s168 = smul.u32 4, %s14
      %p169 = scmp.lt.s32.totalorder %s168, 7
      %s170 = scalar_select %p169, %s168, 7
      %s171 = smul.addr %s170, 4
      %s172 = scalar_lea.vmem %s0, %s171
      %s173 = smul.u32 4, %s14
      %s174 = smul.u32 64, %s14
      %p175 = scmp.lt.s32.totalorder %s174, 127
      %s176 = scalar_select %p175, %s174, 127
      %s177 = smul.addr %s176, 4
      %s178 = scalar_lea.vmem %s1, %s177
      %s179 = smul.u32 64, %s14
      %p181 = scmp.eq.s32.totalorder %s14, 0
      // Predicated region
      $region33: #{action_state_model_forward.5} parent=31 // pred_check
        %p182 = pneg %p181
      $region34: #{action_state_model_forward.5} parent=31 // pred_check_branch
        %184 = sbr.rel (%p182) target = $region36
      $region35: #{action_state_model_forward.5} parent=31 // pred_region
        %vm185 = vcmask 31744
        %186 = vst.msk [vmem:[#allocation2] sm:$0xff] %vm185, 0.0
      $region36: #{action_state_model_forward.5} parent=31 // pred_fallthru
        _
      %v187 = vld [vmem:[#allocation2] sm:$0xff]
      %v188 = vld [vmem:[%s172] sm:$0xff]
      %v189 = vld [vmem:[%s172 + $0x8] sm:$0xff]
      %v190 = vld [vmem:[%s178] sm:$0xf]
      %v191 = vld [vmem:[%s178 + $0x4] sm:$0xf]
      %v192 = vld [vmem:[%s178 + $0x8] sm:$0xf]
      %v193 = vld [vmem:[%s178 + $0xc] sm:$0xf]
      %v194 = vld [vmem:[%s178 + $0x10] sm:$0xf]
      %v195 = vld [vmem:[%s178 + $0x14] sm:$0xf]
      %v196 = vld [vmem:[%s178 + $0x18] sm:$0xf]
      %v197 = vld [vmem:[%s178 + $0x1c] sm:$0xf]
      %v198 = vld [vmem:[%s178 + $0x20] sm:$0xf]
      %v199 = vld [vmem:[%s178 + $0x24] sm:$0xf]
      %v200 = vld [vmem:[%s178 + $0x28] sm:$0xf]
      %v201 = vld [vmem:[%s178 + $0x2c] sm:$0xf]
      %v202 = vld [vmem:[%s178 + $0x30] sm:$0xf]
      %v203 = vld [vmem:[%s178 + $0x34] sm:$0xf]
      %v204 = vld [vmem:[%s178 + $0x38] sm:$0xf]
      %v205 = vld [vmem:[%s178 + $0x3c] sm:$0xf]
      %v206 = vld [vmem:[%s178 + $0x40] sm:$0xf]
      %v207 = vld [vmem:[%s178 + $0x44] sm:$0xf]
      %v208 = vld [vmem:[%s178 + $0x48] sm:$0xf]
      %v209 = vld [vmem:[%s178 + $0x4c] sm:$0xf]
      %v210 = vld [vmem:[%s178 + $0x50] sm:$0xf]
      %v211 = vld [vmem:[%s178 + $0x54] sm:$0xf]
      %v212 = vld [vmem:[%s178 + $0x58] sm:$0xf]
      %v213 = vld [vmem:[%s178 + $0x5c] sm:$0xf]
      %v214 = vld [vmem:[%s178 + $0x60] sm:$0xf]
      %v215 = vld [vmem:[%s178 + $0x64] sm:$0xf]
      %v216 = vld [vmem:[%s178 + $0x68] sm:$0xf]
      %v217 = vld [vmem:[%s178 + $0x6c] sm:$0xf]
      %v218 = vld [vmem:[%s178 + $0x70] sm:$0xf]
      %v219 = vld [vmem:[%s178 + $0x74] sm:$0xf]
      %v220 = vld [vmem:[%s178 + $0x78] sm:$0xf]
      %v221 = vld [vmem:[%s178 + $0x7c] sm:$0xf]
      %v222 = vld [vmem:[%s178 + $0x80] sm:$0xf]
      %v223 = vld [vmem:[%s178 + $0x84] sm:$0xf]
      %v224 = vld [vmem:[%s178 + $0x88] sm:$0xf]
      %v225 = vld [vmem:[%s178 + $0x8c] sm:$0xf]
      %v226 = vld [vmem:[%s178 + $0x90] sm:$0xf]
      %v227 = vld [vmem:[%s178 + $0x94] sm:$0xf]
      %v228 = vld [vmem:[%s178 + $0x98] sm:$0xf]
      %v229 = vld [vmem:[%s178 + $0x9c] sm:$0xf]
      %v230 = vld [vmem:[%s178 + $0xa0] sm:$0xf]
      %v231 = vld [vmem:[%s178 + $0xa4] sm:$0xf]
      %v232 = vld [vmem:[%s178 + $0xa8] sm:$0xf]
      %v233 = vld [vmem:[%s178 + $0xac] sm:$0xf]
      %v234 = vld [vmem:[%s178 + $0xb0] sm:$0xf]
      %v235 = vld [vmem:[%s178 + $0xb4] sm:$0xf]
      %v236 = vld [vmem:[%s178 + $0xb8] sm:$0xf]
      %v237 = vld [vmem:[%s178 + $0xbc] sm:$0xf]
      %v238 = vld [vmem:[%s178 + $0xc0] sm:$0xf]
      %v239 = vld [vmem:[%s178 + $0xc4] sm:$0xf]
      %v240 = vld [vmem:[%s178 + $0xc8] sm:$0xf]
      %v241 = vld [vmem:[%s178 + $0xcc] sm:$0xf]
      %v242 = vld [vmem:[%s178 + $0xd0] sm:$0xf]
      %v243 = vld [vmem:[%s178 + $0xd4] sm:$0xf]
      %v244 = vld [vmem:[%s178 + $0xd8] sm:$0xf]
      %v245 = vld [vmem:[%s178 + $0xdc] sm:$0xf]
      %v246 = vld [vmem:[%s178 + $0xe0] sm:$0xf]
      %v247 = vld [vmem:[%s178 + $0xe4] sm:$0xf]
      %v248 = vld [vmem:[%s178 + $0xe8] sm:$0xf]
      %v249 = vld [vmem:[%s178 + $0xec] sm:$0xf]
      %v250 = vld [vmem:[%s178 + $0xf0] sm:$0xf]
      %v251 = vld [vmem:[%s178 + $0xf4] sm:$0xf]
      %v252 = vld [vmem:[%s178 + $0xf8] sm:$0xf]
      %v253 = vld [vmem:[%s178 + $0xfc] sm:$0xf]
      %v256 = vunpack.c.l.b16 %v188
      %v257 = vunpack.c.h.b16 %v188
      %v258 = vunpack.c.l.b16 %v189
      %v259 = vunpack.c.h.b16 %v189
      %v260 = vpack.c.b16 %v256, %v256
      %v261 = vpack.c.b16 %v257, %v257
      %v262 = vpack.c.b16 %v258, %v258
      %v263 = vpack.c.b16 %v259, %v259
      %v332 = vunpack.c.l.b16 %v190
      %v333 = vunpack.c.l.b16 %v191
      %v334 = vunpack.c.l.b16 %v192
      %v335 = vunpack.c.l.b16 %v193
      %v336 = vunpack.c.l.b16 %v194
      %v337 = vunpack.c.l.b16 %v195
      %v338 = vunpack.c.l.b16 %v196
      %v339 = vunpack.c.l.b16 %v197
      %v340 = vunpack.c.l.b16 %v198
      %v341 = vunpack.c.l.b16 %v199
      %v342 = vunpack.c.l.b16 %v200
      %v343 = vunpack.c.l.b16 %v201
      %v344 = vunpack.c.l.b16 %v202
      %v345 = vunpack.c.l.b16 %v203
      %v346 = vunpack.c.l.b16 %v204
      %v347 = vunpack.c.l.b16 %v205
      %v348 = vunpack.c.l.b16 %v206
      %v349 = vunpack.c.l.b16 %v207
      %v350 = vunpack.c.l.b16 %v208
      %v351 = vunpack.c.l.b16 %v209
      %v352 = vunpack.c.l.b16 %v210
      %v353 = vunpack.c.l.b16 %v211
      %v354 = vunpack.c.l.b16 %v212
      %v355 = vunpack.c.l.b16 %v213
      %v356 = vunpack.c.l.b16 %v214
      %v357 = vunpack.c.l.b16 %v215
      %v358 = vunpack.c.l.b16 %v216
      %v359 = vunpack.c.l.b16 %v217
      %v360 = vunpack.c.l.b16 %v218
      %v361 = vunpack.c.l.b16 %v219
      %v362 = vunpack.c.l.b16 %v220
      %v363 = vunpack.c.l.b16 %v221
      %v364 = vunpack.c.l.b16 %v222
      %v365 = vunpack.c.l.b16 %v223
      %v366 = vunpack.c.l.b16 %v224
      %v367 = vunpack.c.l.b16 %v225
      %v368 = vunpack.c.l.b16 %v226
      %v369 = vunpack.c.l.b16 %v227
      %v370 = vunpack.c.l.b16 %v228
      %v371 = vunpack.c.l.b16 %v229
      %v372 = vunpack.c.l.b16 %v230
      %v373 = vunpack.c.l.b16 %v231
      %v374 = vunpack.c.l.b16 %v232
      %v375 = vunpack.c.l.b16 %v233
      %v376 = vunpack.c.l.b16 %v234
      %v377 = vunpack.c.l.b16 %v235
      %v378 = vunpack.c.l.b16 %v236
      %v379 = vunpack.c.l.b16 %v237
      %v380 = vunpack.c.l.b16 %v238
      %v381 = vunpack.c.l.b16 %v239
      %v382 = vunpack.c.l.b16 %v240
      %v383 = vunpack.c.l.b16 %v241
      %v384 = vunpack.c.l.b16 %v242
      %v385 = vunpack.c.l.b16 %v243
      %v386 = vunpack.c.l.b16 %v244
      %v387 = vunpack.c.l.b16 %v245
      %v388 = vunpack.c.l.b16 %v246
      %v389 = vunpack.c.l.b16 %v247
      %v390 = vunpack.c.l.b16 %v248
      %v391 = vunpack.c.l.b16 %v249
      %v392 = vunpack.c.l.b16 %v250
      %v393 = vunpack.c.l.b16 %v251
      %v394 = vunpack.c.l.b16 %v252
      %v395 = vunpack.c.l.b16 %v253
      %v396 = vpack.c.b16 %v333, %v332
      %v397 = vpack.c.b16 %v335, %v334
      %v398 = vpack.c.b16 %v337, %v336
      %v399 = vpack.c.b16 %v339, %v338
      %v400 = vpack.c.b16 %v341, %v340
      %v401 = vpack.c.b16 %v343, %v342
      %v402 = vpack.c.b16 %v345, %v344
      %v403 = vpack.c.b16 %v347, %v346
      %v404 = vpack.c.b16 %v349, %v348
      %v405 = vpack.c.b16 %v351, %v350
      %v406 = vpack.c.b16 %v353, %v352
      %v407 = vpack.c.b16 %v355, %v354
      %v408 = vpack.c.b16 %v357, %v356
      %v409 = vpack.c.b16 %v359, %v358
      %v410 = vpack.c.b16 %v361, %v360
      %v411 = vpack.c.b16 %v363, %v362
      %v412 = vpack.c.b16 %v365, %v364
      %v413 = vpack.c.b16 %v367, %v366
      %v414 = vpack.c.b16 %v369, %v368
      %v415 = vpack.c.b16 %v371, %v370
      %v416 = vpack.c.b16 %v373, %v372
      %v417 = vpack.c.b16 %v375, %v374
      %v418 = vpack.c.b16 %v377, %v376
      %v419 = vpack.c.b16 %v379, %v378
      %v420 = vpack.c.b16 %v381, %v380
      %v421 = vpack.c.b16 %v383, %v382
      %v422 = vpack.c.b16 %v385, %v384
      %v423 = vpack.c.b16 %v387, %v386
      %v424 = vpack.c.b16 %v389, %v388
      %v425 = vpack.c.b16 %v391, %v390
      %v426 = vpack.c.b16 %v393, %v392
      %v427 = vpack.c.b16 %v395, %v394
      %460 = vmatprep.subr.bf16.mxu0 0
      %461 = vmatpush1.bf16.msra.mxu0 %v403
      %462 = vmatprep.subr.bf16.mxu0 0
      %463 = vmatpush1.bf16.msra.mxu0 %v402
      %464 = vmatprep.subr.bf16.mxu0 0
      %465 = vmatpush1.bf16.msra.mxu0 %v401
      %466 = vmatprep.subr.bf16.mxu0 0
      %467 = vmatpush1.bf16.msra.mxu0 %v400
      %468 = vmatprep.subr.bf16.mxu0 0
      %469 = vmatpush1.bf16.msra.mxu0 %v399
      %470 = vmatprep.subr.bf16.mxu0 0
      %471 = vmatpush1.bf16.msra.mxu0 %v398
      %472 = vmatprep.subr.bf16.mxu0 0
      %473 = vmatpush1.bf16.msra.mxu0 %v397
      %474 = vmatprep.subr.bf16.mxu0 0
      %475 = vmatpush1.bf16.msra.mxu0 %v396
      %476 = vmatprep.subr.bf16.mxu0 0
      %477 = vmatpush2.bf16.msra.mxu0 %v411
      %478 = vmatprep.subr.bf16.mxu0 0
      %479 = vmatpush2.bf16.msra.mxu0 %v410
      %480 = vmatprep.subr.bf16.mxu0 0
      %481 = vmatpush2.bf16.msra.mxu0 %v409
      %482 = vmatprep.subr.bf16.mxu0 0
      %483 = vmatpush2.bf16.msra.mxu0 %v408
      %484 = vmatprep.subr.bf16.mxu0 0
      %485 = vmatpush2.bf16.msra.mxu0 %v407
      %486 = vmatprep.subr.bf16.mxu0 0
      %487 = vmatpush2.bf16.msra.mxu0 %v406
      %488 = vmatprep.subr.bf16.mxu0 0
      %489 = vmatpush2.bf16.msra.mxu0 %v405
      %490 = vmatprep.subr.bf16.mxu0 0
      %491 = vmatpush2.bf16.msra.mxu0 %v404
      %492 = vmatprep.mubr.bf16.mxu0 %v261
      %493 = vmatmul.mubr.bf16.gmra.mxu0 %v260
      %v494 = vpop.f32.mrf.mxu0
      %v495 = vadd.f32 0.0, %v494
      %v496 = vpop.f32.mrf.mxu0
      %v497 = vpop.f32.mrf.mxu0
      %v498 = vpop.f32.mrf.mxu0
      %499 = vdwg.mxu0
      %500 = vmatprep.subr.bf16.mxu0 0
      %501 = vmatpush1.bf16.msra.mxu0 %v419
      %502 = vmatprep.subr.bf16.mxu0 0
      %503 = vmatpush1.bf16.msra.mxu0 %v418
      %504 = vmatprep.subr.bf16.mxu0 0
      %505 = vmatpush1.bf16.msra.mxu0 %v417
      %506 = vmatprep.subr.bf16.mxu0 0
      %507 = vmatpush1.bf16.msra.mxu0 %v416
      %508 = vmatprep.subr.bf16.mxu0 0
      %509 = vmatpush1.bf16.msra.mxu0 %v415
      %510 = vmatprep.subr.bf16.mxu0 0
      %511 = vmatpush1.bf16.msra.mxu0 %v414
      %512 = vmatprep.subr.bf16.mxu0 0
      %513 = vmatpush1.bf16.msra.mxu0 %v413
      %514 = vmatprep.subr.bf16.mxu0 0
      %515 = vmatpush1.bf16.msra.mxu0 %v412
      %516 = vmatprep.subr.bf16.mxu0 0
      %517 = vmatpush2.bf16.msra.mxu0 %v427
      %518 = vmatprep.subr.bf16.mxu0 0
      %519 = vmatpush2.bf16.msra.mxu0 %v426
      %520 = vmatprep.subr.bf16.mxu0 0
      %521 = vmatpush2.bf16.msra.mxu0 %v425
      %522 = vmatprep.subr.bf16.mxu0 0
      %523 = vmatpush2.bf16.msra.mxu0 %v424
      %524 = vmatprep.subr.bf16.mxu0 0
      %525 = vmatpush2.bf16.msra.mxu0 %v423
      %526 = vmatprep.subr.bf16.mxu0 0
      %527 = vmatpush2.bf16.msra.mxu0 %v422
      %528 = vmatprep.subr.bf16.mxu0 0
      %529 = vmatpush2.bf16.msra.mxu0 %v421
      %530 = vmatprep.subr.bf16.mxu0 0
      %531 = vmatpush2.bf16.msra.mxu0 %v420
      %532 = vmatprep.mubr.bf16.mxu0 %v263
      %533 = vmatmul.mubr.bf16.gmra.mxu0 %v262
      %v534 = vpop.f32.mrf.mxu0
      %v535 = vadd.f32 %v495, %v534
      %v536 = vpop.f32.mrf.mxu0
      %v537 = vpop.f32.mrf.mxu0
      %v538 = vpop.f32.mrf.mxu0
      %539 = vdwg.mxu0
      %v540 = vadd.f32 %v187, %v535
      %vm541 = vcmask 31744
      %542 = vst.msk [vmem:[#allocation2] sm:$0xff] %vm541, %v540
      %p543 = scmp.eq.s32.totalorder %s14, 1
      // Predicated region
      $region37: #{action_state_model_forward.5} parent=31 // pred_check
        %p544 = pneg %p543
      $region38: #{action_state_model_forward.5} parent=31 // pred_check_branch
        %546 = sbr.rel (%p544) target = $region40
      $region39: #{action_state_model_forward.5} parent=31 // pred_region
        %v547 = vld [vmem:[#allocation2] sm:$0xff]
        %v548 = vld [vmem:[%s2] sm:$0x1]
        %v550 = vlaneseq
        %v551 = vshrl.u32 %v550, 7
        %v552 = vsub.s32 0, %v551
        %v553 = vrot.slane %v548, %v552
        %v555 = vadd.f32 %v547, %v553
        %556 = vst.msk [vmem:[%s3] sm:$0xff] %vm541, %v555
      $region40: #{action_state_model_forward.5} parent=31 // pred_fallthru
        _
      // Predicated region
      $region41: #{action_state_model_forward.5} parent=31 // pred_check
        %p557 = pneg %p100
      $region42: #{action_state_model_forward.5} parent=31 // pred_check_branch
        %559 = sbr.rel (%p557) target = $region44
      $region43: #{action_state_model_forward.5} parent=31 // pred_region
        _
      $region44: #{action_state_model_forward.5} parent=31 // pred_fallthru
        _
      // Predicated region
      $region45: #{action_state_model_forward.5} parent=31 // pred_check
        %p560 = pneg %p100
      $region46: #{action_state_model_forward.5} parent=31 // pred_check_branch
        %562 = sbr.rel (%p560) target = $region48
      $region47: #{action_state_model_forward.5} parent=31 // pred_region
        _
      $region48: #{action_state_model_forward.5} parent=31 // pred_fallthru
        _
    $region32: #{action_state_model_forward.5} parent=5 // pred_fallthru
      _
    %p563 = scmp.le.s32.totalorder 2, %s9
    // Predicated region
    $region49: #{action_state_model_forward.5} parent=5 // pred_check
      %p564 = pneg %p563
    $region50: #{action_state_model_forward.5} parent=5 // pred_check_branch
      %566 = sbr.rel (%p564) target = $region52
    $region51: #{action_state_model_forward.5} parent=5 // pred_region
      %s567 = ssub.s32 %s9, 2
    $region52: #{action_state_model_forward.5} parent=5 // pred_fallthru
      _
  $region6: #{action_state_model_forward.5} parent=0 // loop_footer
    %s13 = sadd.s32 1, %s9
  $region7: #{action_state_model_forward.5} parent=0 // loop_footer_branch
    %8 = sbr.rel target = $region3
  $region8: #{action_state_model_forward.5} parent=0 // loop_exit
    _

</llo_original>
